<compile_context>
chip_gen: v7x
topology: tpu7x:2x2x1
jax: 0.10.0
libtpu: 0.0.40
codegen_flags: <defaults>
</compile_context>

<pallas_src>
import numpy as np
import jax
import jax.numpy as jnp
from jax.experimental import pallas as pl
from jax.experimental.pallas import tpu as pltpu

_LANES = 256          # lane-dense last dim (multiple of 128)
_BLOCK_ROWS = 2048    # 2048 * 256 * 4 B = 2 MiB per block per array


def _make_qdq_add_kernel(scale, zp, qmin, qmax):
    """Elementwise fake-quant + residual add with per-tensor params baked in."""
    scale_f = float(np.float32(scale))
    # torch's decomposed quantize_per_tensor uses x * (1/scale); mirror that.
    inv_scale_f = float(np.float32(1.0) / np.float32(scale))
    zp_f = float(int(zp))
    qmin_f = float(qmin)
    qmax_f = float(qmax)

    def kernel(x_ref, o_ref):
        x = x_ref[...]                          # f32 [TR, _LANES]
        # quantize: round(x * inv_scale) + zp, clamp to [qmin, qmax]
        q = jnp.round(x * inv_scale_f)
        if zp_f != 0.0:
            q = q + zp_f
        q = jnp.clip(q, qmin_f, qmax_f)
        # q is already an exact integer in f32 -> no uint8 round-trip needed
        # dequantize: (q - zp) * scale, then residual add
        if zp_f != 0.0:
            q = q - zp_f
        o_ref[...] = q * scale_f + x

    return kernel


def qdq_residual_add(x, scale=0.003, zp=0, qmin=0, qmax=127):
    """out = dequantize_per_tensor(quantize_per_tensor(x)) + x  (uint8 fake quant)."""
    orig_shape = x.shape
    n = x.size
    x_flat = jnp.ravel(x)

    # Lane-dense 2D slab [rows, _LANES]; pad only the minimal amount required
    # so the block grid divides exactly (zero padding for tile-aligned sizes).
    rows = -(-n // _LANES)
    rows = -(-rows // 8) * 8                    # sublane-align
    tr = min(_BLOCK_ROWS, rows)                 # block rows (multiple of 8)
    rows = -(-rows // tr) * tr                  # make grid exact (< 1 block extra)
    n_pad = rows * _LANES
    if n_pad != n:
        x_flat = jnp.pad(x_flat, (0, n_pad - n))
    x2d = x_flat.reshape(rows, _LANES)
    num_blocks = rows // tr

    kernel = _make_qdq_add_kernel(scale, zp, qmin, qmax)

    out2d = pl.pallas_call(
        kernel,
        out_shape=jax.ShapeDtypeStruct((rows, _LANES), jnp.float32),
        grid=(num_blocks,),
        in_specs=[pl.BlockSpec((tr, _LANES), lambda i: (i, 0))],
        out_specs=pl.BlockSpec((tr, _LANES), lambda i: (i, 0)),
        compiler_params=pltpu.CompilerParams(
            dimension_semantics=("parallel",)),
    )(x2d)

    if n_pad != n:
        out = out2d.reshape(-1)[:n].reshape(orig_shape)
    else:
        out = out2d.reshape(orig_shape)
    return out


def _reference(x, scale=0.003, zp=0, qmin=0, qmax=127):
    # Pure-JAX mirror of quantized_decomposed.{quantize,dequantize}_per_tensor + add
    s = np.float32(scale)
    inv = np.float32(1.0) / s
    z = np.float32(int(zp))
    q = jnp.clip(jnp.round(x * inv) + z, float(qmin), float(qmax)).astype(jnp.uint8)
    dq = (q.astype(jnp.float32) - z) * s
    return dq + x


if __name__ == "__main__":
    key = jax.random.PRNGKey(0)
    # small NCHW input consistent with the module's elementwise forward
    x = jax.random.uniform(key, (2, 4, 16, 16), dtype=jnp.float32) * 0.4

    out = qdq_residual_add(x, scale=0.003, zp=0, qmin=0, qmax=127)
    jax.block_until_ready(out)

    ref = _reference(x)
    assert out.shape == x.shape and out.dtype == jnp.float32
    assert jnp.allclose(out, ref, atol=1e-6, rtol=1e-6)

    print("KERNEL_OK")
</pallas_src>

<mosaic_0001>
module attributes {stable_mosaic.version = 11 : i64} {
  func.func @kernel(%arg0: i32, %arg1: memref<8x256xf32, #tpu.memory_space<vmem>>, %arg2: memref<8x256xf32, #tpu.memory_space<vmem>>) attributes {dimension_semantics = [#tpu.dimension_semantics<parallel>], iteration_bounds = array<i64: 1>, scalar_prefetch = 0 : i64, scratch_operands = 0 : i64, tpu.core_type = #tpu.core_type<tc>, window_params = [{transform_indices = @transform_0, window_bounds = array<i64: 8, 256>}, {transform_indices = @transform_1, window_bounds = array<i64: 8, 256>}]} {
    %c0 = arith.constant 0 : index
    %c0_0 = arith.constant 0 : index
    %0 = vector.load %arg1[%c0, %c0_0] : memref<8x256xf32, #tpu.memory_space<vmem>>, vector<8x256xf32>
    %cst = arith.constant 333.333344 : f32
    %1 = vector.broadcast %cst : f32 to vector<8x256xf32>
    %2 = arith.mulf %0, %1 : vector<8x256xf32>
    %3 = math.roundeven %2 : vector<8x256xf32>
    %cst_1 = arith.constant 0.000000e+00 : f32
    %cst_2 = arith.constant 1.270000e+02 : f32
    %4 = vector.broadcast %cst_1 : f32 to vector<8x256xf32>
    %5 = arith.maximumf %4, %3 : vector<8x256xf32>
    %6 = vector.broadcast %cst_2 : f32 to vector<8x256xf32>
    %7 = arith.minimumf %6, %5 : vector<8x256xf32>
    %cst_3 = arith.constant 3.000000e-03 : f32
    %8 = vector.broadcast %cst_3 : f32 to vector<8x256xf32>
    %9 = arith.mulf %7, %8 : vector<8x256xf32>
    %10 = arith.addf %9, %0 : vector<8x256xf32>
    %c0_4 = arith.constant 0 : index
    %c0_5 = arith.constant 0 : index
    %11 = vector.load %arg2[%c0_4, %c0_5] : memref<8x256xf32, #tpu.memory_space<vmem>>, vector<8x256xf32>
    tpu.vector_store %arg2[%c0_4, %c0_5], %10 {strides = array<i32>} : memref<8x256xf32, #tpu.memory_space<vmem>>, vector<8x256xf32>,
    return
  }
  func.func @transform_0(%arg0: i32) -> (i32, i32) {
    %c0_i32 = arith.constant 0 : i32
    %c0_i32_0 = arith.constant 0 : i32
    return %arg0, %c0_i32 : i32, i32
  }
  func.func @transform_1(%arg0: i32) -> (i32, i32) {
    %c0_i32 = arith.constant 0 : i32
    %c0_i32_0 = arith.constant 0 : i32
    return %arg0, %c0_i32 : i32, i32
  }
}

</mosaic_0001>

<llo_original>
// kernel: tpu_custom_call.1
$region0: #{tpu_custom_call.1}
  #allocation0 [shape = 'u32[]', space=smem, size = 0x4, offset = 0x4, fixed_abs, tag = 'smem constant byte address 0x4 - core index']
  #allocation1 [shape = 'u32[144,128]{1,0:T(1,128)}', space=vmem, size = 0x12000, scoped, tag = 'internal scratch']
  %s0 = inlined_call_operand.hbm [shape: f32[8,256], index: 0, kind: input, shape index: {}]
  %s1 = inlined_call_operand.hbm [shape: f32[8,256], index: 1, kind: output, shape index: {}]
  %s2 = sld [smem:[#allocation0]]
  $region18: #{tpu_custom_call.1} parent=0
    _
  %s4 = ssub.s32 1, %s2
  %s5 = scalar_select 0, %s4, %s2
  $region1: #{tpu_custom_call.1} parent=0
    #allocation2 [shape = 'u8[8192]{0}', space=vmem, size = 0x2000, scoped, tag = 'input window, operand 0, single buffered']
    #allocation3 [shape = 's32[1]{0}', space=sflag, size = 0x4, scoped, tag = 'scoped memory for tpu_custom_call.1']
    #allocation4 [shape = 's32[1]{0}', space=sflag, size = 0x4, scoped, tag = 'scoped memory for tpu_custom_call.1']
    #allocation5 [shape = 'u8[8192]{0}', space=vmem, size = 0x2000, scoped, tag = 'output window, operand 0, single buffered']
    %6 = vsyncpa [#allocation3], 0
    %7 = vsyncpa [#allocation4], 0
    // Predicated region
    $region2: #{tpu_custom_call.1} parent=1 // pred_check
      _
    $region3: #{tpu_custom_call.1} parent=1 // pred_check_branch
      %9 = sbr.rel (0) target = $region5
    $region4: #{tpu_custom_call.1} parent=1 // pred_region
      %s11 = ssub.s32 256, 256
      %12 = vsyncadd [#allocation3], %s11
      %s14 = sshll.u32 [#allocation2], 4
      %s15 = int_to_ptr.vmem [resolvable:$true] %s14
      %17 = dma.hbm_to_vmem [thread:$0]  %s0, 256, %s15, [#allocation3]
    $region5: #{tpu_custom_call.1} parent=1 // pred_fallthru
      _
    // Predicated region
    $region6: #{tpu_custom_call.1} parent=1 // pred_check
      _
    $region7: #{tpu_custom_call.1} parent=1 // pred_check_branch
      %19 = sbr.rel (0) target = $region9
    $region8: #{tpu_custom_call.1} parent=1 // pred_region
      %20 = dma.done [#allocation3], 256
    $region9: #{tpu_custom_call.1} parent=1 // pred_fallthru
      _
    %v21 = vld [vmem:[#allocation2] sm:$0xff]
    %v22 = vld [vmem:[#allocation2 + $0x8] sm:$0xff]
    %v23 = vmul.f32 %v21, 333.33334
    %v24 = vmul.f32 %v22, 333.33334
    %v25 = vround.ne.pseudo %v23
    %v26 = vround.ne.pseudo %v24
    %v27 = vmax.f32 %v25, 0.0
    %v28 = vmax.f32 %v26, 0.0
    %v29 = vmin.f32 %v27, 127.0
    %v30 = vmin.f32 %v28, 127.0
    %v31 = vmul.f32 %v29, 0.003
    %v32 = vmul.f32 %v30, 0.003
    %v33 = vadd.f32 %v31, %v21
    %v34 = vadd.f32 %v32, %v22
    %35 = vst [vmem:[#allocation5] sm:$0xff] %v33
    %36 = vst [vmem:[#allocation5 + $0x8] sm:$0xff] %v34
    // Predicated region
    $region10: #{tpu_custom_call.1} parent=1 // pred_check
      _
    $region11: #{tpu_custom_call.1} parent=1 // pred_check_branch
      %38 = sbr.rel (0) target = $region13
    $region12: #{tpu_custom_call.1} parent=1 // pred_region
      %s40 = ssub.s32 256, 256
      %41 = vsyncadd [#allocation4], %s40
      %s43 = sshll.u32 [#allocation5], 4
      %s44 = int_to_ptr.vmem [resolvable:$true] %s43
      %46 = dma.vmem_to_hbm [thread:$0]  %s44, 256, %s1, [#allocation4]
    $region13: #{tpu_custom_call.1} parent=1 // pred_fallthru
      _
    // Predicated region
    $region14: #{tpu_custom_call.1} parent=1 // pred_check
      _
    $region15: #{tpu_custom_call.1} parent=1 // pred_check_branch
      %48 = sbr.rel (0) target = $region17
    $region16: #{tpu_custom_call.1} parent=1 // pred_region
      %49 = dma.done [#allocation4], 256
    $region17: #{tpu_custom_call.1} parent=1 // pred_fallthru
      _
    %50 = vsyncpa [#allocation3], 1
    %51 = vsyncpa [#allocation4], 1

</llo_original>
